<compile_context>
chip_gen: v7x
topology: tpu7x:2x2x1
jax: 0.10.0
libtpu: 0.0.40
codegen_flags: <defaults>
</compile_context>

<pallas_src>
import jax
import jax.numpy as jnp
from jax.experimental import pallas as pl
from jax.experimental.pallas import tpu as pltpu

LANE = 128            # lane width of a TPU vreg
OUT_LANES = 2 * LANE  # interleaved (ch0, ch1) pairs -> 256 lanes per tile row


def _round_up(a, m):
    return ((a + m - 1) // m) * m


def proposer_kernel(w_ref, b_ref, x_ref, o_ref):
    # w_ref, b_ref : VMEM (1, 256) f32 — [w0, w1, w0, w1, ...] / [b0, b1, b0, b1, ...]
    # x_ref        : VMEM (tb, 256)    — lanes 2j and 2j+1 both hold batch element row*128 + j
    # o_ref        : VMEM (tb, 256)    — even lanes = |x*w0+b0|, odd lanes = |x*w1+b1|
    x = x_ref[...].astype(jnp.float32)           # in-kernel upcast (no-op for f32, free for bf16)
    y = jnp.abs(x * w_ref[...] + b_ref[...])     # pure VPU: mul + add + abs (sublane broadcast)
    o_ref[...] = y.astype(o_ref.dtype)           # optional narrowing only on the store


def proposer_policy_forward(x, weight, bias, *, block_rows=2048, out_dtype=None):
    """Pallas equivalent of ProposerPolicy.forward: abs(Linear(1->2)(x)).

    x:      (B, 1)  float32 / bf16
    weight: (2, 1)  PyTorch nn.Linear layout (out_features, in_features)
    bias:   (2,)
    returns (B, 2)  in `out_dtype` (defaults to x.dtype; math is always f32)
    """
    B = x.shape[0]
    out_dtype = x.dtype if out_dtype is None else out_dtype
    if B == 0:  # guard: empty batch (previous version divided by zero here)
        return jnp.zeros((0, 2), out_dtype)

    # Lane patterns for the interleaved channels: lane l uses weight[l & 1], bias[l & 1].
    w_row = jnp.tile(weight.reshape(2).astype(jnp.float32), LANE).reshape(1, OUT_LANES)
    b_row = jnp.tile(bias.reshape(2).astype(jnp.float32), LANE).reshape(1, OUT_LANES)

    # Tiling: batch pairs on lanes; aim for >= 2 grid steps (v7x megacore) without exceeding
    # block_rows; rows per tile must be a multiple of 8 sublanes.
    rows_needed = -(-B // LANE)
    tb = min(block_rows, _round_up(-(-rows_needed // 2), 8))
    tb = max(8, (tb // 8) * 8)
    num_tiles = -(-rows_needed // tb)
    padded_rows = num_tiles * tb

    # Duplicate each x value into an adjacent lane pair and pad to the tile grid — a single
    # dense XLA fusion (read B, write ~2B).  Replaces the old pad + strided transpose.
    x_dup = jnp.repeat(x.reshape(B), 2)
    pad = padded_rows * OUT_LANES - 2 * B
    x2d = jnp.pad(x_dup, (0, pad)).reshape(padded_rows, OUT_LANES)

    out2 = pl.pallas_call(
        proposer_kernel,
        out_shape=jax.ShapeDtypeStruct((padded_rows, OUT_LANES), out_dtype),
        grid=(num_tiles,),
        in_specs=[
            # Tiny lane-pattern rows: single block, stays resident across all grid steps.
            pl.BlockSpec((1, OUT_LANES), lambda i: (0, 0)),
            pl.BlockSpec((1, OUT_LANES), lambda i: (0, 0)),
            # Batch tiles, double-buffered / pipelined by BlockSpec.
            pl.BlockSpec((tb, OUT_LANES), lambda i: (i, 0)),
        ],
        out_specs=pl.BlockSpec((tb, OUT_LANES), lambda i: (i, 0)),
        compiler_params=pltpu.CompilerParams(
            dimension_semantics=("parallel",),  # v7x: shard tiles across both TensorCores
        ),
    )(w_row, b_row, x2d)

    # Free row-major reshape: lane pairs become the (batch, channel) minor dims of (B, 2).
    out = out2.reshape(padded_rows * LANE, 2)
    if padded_rows * LANE != B:
        # Contiguous prefix slice; padded rows only ever held abs(bias) garbage.
        out = out[:B]
    return out


if __name__ == "__main__":
    key = jax.random.PRNGKey(0)
    kx, kw, kb, kx2 = jax.random.split(key, 4)

    # nn.Linear(1, 2) default init is U(-1/sqrt(in_features), 1/sqrt(in_features)) = U(-1, 1).
    weight = jax.random.uniform(kw, (2, 1), jnp.float32, minval=-1.0, maxval=1.0)
    bias = jax.random.uniform(kb, (2,), jnp.float32, minval=-1.0, maxval=1.0)

    fwd = jax.jit(proposer_policy_forward)

    # Small example input: batch=8, in_features=1 (the "pie fraction" scalar).
    x = jax.random.uniform(kx, (8, 1), jnp.float32)
    out = jax.block_until_ready(fwd(x, weight, bias))
    ref = jnp.abs(x @ weight.T + bias)
    assert out.shape == (8, 2)
    assert jnp.allclose(out, ref, atol=1e-6), "mismatch vs reference (B=8)"

    # Multi-tile / padded path (>= 2 grid steps — the v7x-friendly split).
    x2 = jax.random.uniform(kx2, (1200, 1), jnp.float32)
    out_big = jax.block_until_ready(fwd(x2, weight, bias))
    ref_big = jnp.abs(x2 @ weight.T + bias)
    assert out_big.shape == (1200, 2)
    assert jnp.allclose(out_big, ref_big, atol=1e-6), "mismatch vs reference (B=1200)"

    print("KERNEL_OK")
</pallas_src>

<mosaic_0001>
module attributes {stable_mosaic.version = 11 : i64} {
  func.func @proposer_kernel(%arg0: i32, %arg1: memref<1x256xf32, #tpu.memory_space<vmem>>, %arg2: memref<1x256xf32, #tpu.memory_space<vmem>>, %arg3: memref<8x256xf32, #tpu.memory_space<vmem>>, %arg4: memref<8x256xf32, #tpu.memory_space<vmem>>) attributes {dimension_semantics = [#tpu.dimension_semantics<parallel>], iteration_bounds = array<i64: 1>, scalar_prefetch = 0 : i64, scratch_operands = 0 : i64, tpu.core_type = #tpu.core_type<tc>, window_params = [{pipeline_mode = #tpu.pipeline_mode<synchronous>, transform_indices = @transform_0, window_bounds = array<i64: 1, 256>}, {pipeline_mode = #tpu.pipeline_mode<synchronous>, transform_indices = @transform_1, window_bounds = array<i64: 1, 256>}, {transform_indices = @transform_2, window_bounds = array<i64: 8, 256>}, {transform_indices = @transform_3, window_bounds = array<i64: 8, 256>}]} {
    %c0 = arith.constant 0 : index
    %c0_0 = arith.constant 0 : index
    %0 = vector.load %arg3[%c0, %c0_0] : memref<8x256xf32, #tpu.memory_space<vmem>>, vector<8x256xf32>
    %c0_1 = arith.constant 0 : index
    %c0_2 = arith.constant 0 : index
    %1 = vector.load %arg1[%c0_1, %c0_2] : memref<1x256xf32, #tpu.memory_space<vmem>>, vector<1x256xf32>
    %2 = vector.broadcast %1 : vector<1x256xf32> to vector<8x256xf32>
    %3 = arith.mulf %0, %2 : vector<8x256xf32>
    %c0_3 = arith.constant 0 : index
    %c0_4 = arith.constant 0 : index
    %4 = vector.load %arg2[%c0_3, %c0_4] : memref<1x256xf32, #tpu.memory_space<vmem>>, vector<1x256xf32>
    %5 = vector.broadcast %4 : vector<1x256xf32> to vector<8x256xf32>
    %6 = arith.addf %3, %5 : vector<8x256xf32>
    %7 = math.absf %6 : vector<8x256xf32>
    %c0_5 = arith.constant 0 : index
    %c0_6 = arith.constant 0 : index
    %8 = vector.load %arg4[%c0_5, %c0_6] : memref<8x256xf32, #tpu.memory_space<vmem>>, vector<8x256xf32>
    tpu.vector_store %arg4[%c0_5, %c0_6], %7 {strides = array<i32>} : memref<8x256xf32, #tpu.memory_space<vmem>>, vector<8x256xf32>,
    return
  }
  func.func @transform_0(%arg0: i32) -> (i32, i32) {
    %c0_i32 = arith.constant 0 : i32
    %c0_i32_0 = arith.constant 0 : i32
    %c0_i32_1 = arith.constant 0 : i32
    return %c0_i32, %c0_i32_0 : i32, i32
  }
  func.func @transform_1(%arg0: i32) -> (i32, i32) {
    %c0_i32 = arith.constant 0 : i32
    %c0_i32_0 = arith.constant 0 : i32
    %c0_i32_1 = arith.constant 0 : i32
    return %c0_i32, %c0_i32_0 : i32, i32
  }
  func.func @transform_2(%arg0: i32) -> (i32, i32) {
    %c0_i32 = arith.constant 0 : i32
    %c0_i32_0 = arith.constant 0 : i32
    return %arg0, %c0_i32 : i32, i32
  }
  func.func @transform_3(%arg0: i32) -> (i32, i32) {
    %c0_i32 = arith.constant 0 : i32
    %c0_i32_0 = arith.constant 0 : i32
    return %arg0, %c0_i32 : i32, i32
  }
}

</mosaic_0001>

<llo_original>
// kernel: tile.11
$region0: #{tile.11}
  #allocation0 [shape = 's32[1]{0}', space=sflag, size = 0x4, scoped, tag = 'scoped memory for tile.11']
  %s0 = inlined_call_operand.vmem [shape: f32[2], index: 0, kind: input, shape index: {}]
  %s1 = inlined_call_operand.vmem [shape: f32[128,2], index: 1, kind: output, shape index: {}]
  // Predicated region
  $region2: #{tile.11} parent=0 // pred_check
    _
  $region3: #{tile.11} parent=0 // pred_check_branch
    %3 = sbr.rel (0) target = $region5
  $region4: #{tile.11} parent=0 // pred_region
    _
  $region5: #{tile.11} parent=0 // pred_fallthru
    _
  %v4 = vld [vmem:[%s0] ss:$0 sm:$0xff]
  %5 = vst [vmem:[%s1] sm:$0xff] %v4
  %s6 = scalar_lea.vmem %s1, 8
  %7 = vst [vmem:[%s6] sm:$0xff] %v4
  %s8 = scalar_lea.vmem %s1, 16
  %9 = vst [vmem:[%s8] sm:$0xff] %v4
  %s10 = scalar_lea.vmem %s1, 24
  %11 = vst [vmem:[%s10] sm:$0xff] %v4
  %s12 = scalar_lea.vmem %s1, 32
  %13 = vst [vmem:[%s12] sm:$0xff] %v4
  %s14 = scalar_lea.vmem %s1, 40
  %15 = vst [vmem:[%s14] sm:$0xff] %v4
  %s16 = scalar_lea.vmem %s1, 48
  %17 = vst [vmem:[%s16] sm:$0xff] %v4
  %s18 = scalar_lea.vmem %s1, 56
  %19 = vst [vmem:[%s18] sm:$0xff] %v4
  %s20 = scalar_lea.vmem %s1, 64
  %21 = vst [vmem:[%s20] sm:$0xff] %v4
  %s22 = scalar_lea.vmem %s1, 72
  %23 = vst [vmem:[%s22] sm:$0xff] %v4
  %s24 = scalar_lea.vmem %s1, 80
  %25 = vst [vmem:[%s24] sm:$0xff] %v4
  %s26 = scalar_lea.vmem %s1, 88
  %27 = vst [vmem:[%s26] sm:$0xff] %v4
  %s28 = scalar_lea.vmem %s1, 96
  %29 = vst [vmem:[%s28] sm:$0xff] %v4
  %s30 = scalar_lea.vmem %s1, 104
  %31 = vst [vmem:[%s30] sm:$0xff] %v4
  %s32 = scalar_lea.vmem %s1, 112
  %33 = vst [vmem:[%s32] sm:$0xff] %v4
  %s34 = scalar_lea.vmem %s1, 120
  %35 = vst [vmem:[%s34] sm:$0xff] %v4

// kernel: tile.12
$region0: #{tile.12}
  %s0 = inlined_call_operand.vmem [shape: f32[128,2], index: 0, kind: input, shape index: {}]
  %s1 = inlined_call_operand.vmem [shape: f32[1,256], index: 1, kind: output, shape index: {}]
  $region1: #{tile.12} parent=0
    #allocation0 [shape = 'u8[8192]{0}', space=vmem, size = 0x2000, scoped, tag = 'scoped mem for output reshape']
    %v2 = vld [vmem:[%s0] sm:$0x1]
    %s3 = scalar_lea.vmem %s0, 63
    %v4 = vld [vmem:[%s3] sm:$0x2]
    %vm5 = vcmask 1041409
    %v6 = vsel %vm5, %v4, %v2
    %vm7 = vcmask 15360
    %8 = vst.msk [vmem:[#allocation0] ss:$8 sm:$0x3] %vm7, %v6
    %s9 = scalar_lea.vmem %s0, 63
    %v10 = vld [vmem:[%s9] sm:$0x1]
    %s11 = scalar_lea.vmem %s0, 126
    %v12 = vld [vmem:[%s11] sm:$0x2]
    %vm13 = vcmask 1041409
    %v14 = vsel %vm13, %v12, %v10
    %15 = vrot.lane.b32.xlu0 %v14, 126
    %v16 = vpop.permute.xlu0 %15
    %vm17 = vcmask 1048560
    %18 = vst.msk [vmem:[#allocation0] ss:$8 sm:$0x3] %vm17, %v16
    %s19 = scalar_lea.vmem %s0, 62
    %v20 = vld [vmem:[%s19] sm:$0x1]
    %s21 = scalar_lea.vmem %s0, 125
    %v22 = vld [vmem:[%s21] sm:$0x2]
    %vm23 = vcmask 1041409
    %v24 = vsel %vm23, %v22, %v20
    %25 = vrot.lane.b32.xlu0 %v24, 124
    %v26 = vpop.permute.xlu0 %25
    %vm27 = vcmask 1032160
    %28 = vst.msk [vmem:[#allocation0] ss:$8 sm:$0x3] %vm27, %v26
    %s29 = scalar_lea.vmem %s0, 61
    %v30 = vld [vmem:[%s29] sm:$0x1]
    %s31 = scalar_lea.vmem %s0, 124
    %v32 = vld [vmem:[%s31] sm:$0x2]
    %vm33 = vcmask 1041409
    %v34 = vsel %vm33, %v32, %v30
    %35 = vrot.lane.b32.xlu0 %v34, 122
    %v36 = vpop.permute.xlu0 %35
    %vm37 = vcmask 1015760
    %38 = vst.msk [vmem:[#allocation0] ss:$8 sm:$0x3] %vm37, %v36
    %s39 = scalar_lea.vmem %s0, 60
    %v40 = vld [vmem:[%s39] sm:$0x1]
    %s41 = scalar_lea.vmem %s0, 123
    %v42 = vld [vmem:[%s41] sm:$0x2]
    %vm43 = vcmask 1041409
    %v44 = vsel %vm43, %v42, %v40
    %45 = vrot.lane.b32.xlu0 %v44, 120
    %v46 = vpop.permute.xlu0 %45
    %vm47 = vcmask 999360
    %48 = vst.msk [vmem:[#allocation0] ss:$8 sm:$0x3] %vm47, %v46
    %s49 = scalar_lea.vmem %s0, 59
    %v50 = vld [vmem:[%s49] sm:$0x1]
    %s51 = scalar_lea.vmem %s0, 122
    %v52 = vld [vmem:[%s51] sm:$0x2]
    %vm53 = vcmask 1041409
    %v54 = vsel %vm53, %v52, %v50
    %55 = vrot.lane.b32.xlu0 %v54, 118
    %v56 = vpop.permute.xlu0 %55
    %vm57 = vcmask 982960
    %58 = vst.msk [vmem:[#allocation0] ss:$8 sm:$0x3] %vm57, %v56
    %s59 = scalar_lea.vmem %s0, 58
    %v60 = vld [vmem:[%s59] sm:$0x1]
    %s61 = scalar_lea.vmem %s0, 121
    %v62 = vld [vmem:[%s61] sm:$0x2]
    %vm63 = vcmask 1041409
    %v64 = vsel %vm63, %v62, %v60
    %65 = vrot.lane.b32.xlu0 %v64, 116
    %v66 = vpop.permute.xlu0 %65
    %vm67 = vcmask 966560
    %68 = vst.msk [vmem:[#allocation0] ss:$8 sm:$0x3] %vm67, %v66
    %s69 = scalar_lea.vmem %s0, 57
    %v70 = vld [vmem:[%s69] sm:$0x1]
    %s71 = scalar_lea.vmem %s0, 120
    %v72 = vld [vmem:[%s71] sm:$0x2]
    %vm73 = vcmask 1041409
    %v74 = vsel %vm73, %v72, %v70
    %75 = vrot.lane.b32.xlu0 %v74, 114
    %v76 = vpop.permute.xlu0 %75
    %vm77 = vcmask 950160
    %78 = vst.msk [vmem:[#allocation0] ss:$8 sm:$0x3] %vm77, %v76
    %s79 = scalar_lea.vmem %s0, 56
    %v80 = vld [vmem:[%s79] sm:$0x1]
    %s81 = scalar_lea.vmem %s0, 119
    %v82 = vld [vmem:[%s81] sm:$0x2]
    %vm83 = vcmask 1041409
    %v84 = vsel %vm83, %v82, %v80
    %85 = vrot.lane.b32.xlu0 %v84, 112
    %v86 = vpop.permute.xlu0 %85
    %vm87 = vcmask 933760
    %88 = vst.msk [vmem:[#allocation0] ss:$8 sm:$0x3] %vm87, %v86
    %s89 = scalar_lea.vmem %s0, 55
    %v90 = vld [vmem:[%s89] sm:$0x1]
    %s91 = scalar_lea.vmem %s0, 118
    %v92 = vld [vmem:[%s91] sm:$0x2]
    %vm93 = vcmask 1041409
    %v94 = vsel %vm93, %v92, %v90
    %95 = vrot.lane.b32.xlu0 %v94, 110
    %v96 = vpop.permute.xlu0 %95
    %vm97 = vcmask 917360
    %98 = vst.msk [vmem:[#allocation0] ss:$8 sm:$0x3] %vm97, %v96
    %s99 = scalar_lea.vmem %s0, 54
    %v100 = vld [vmem:[%s99] sm:$0x1]
    %s101 = scalar_lea.vmem %s0, 117
    %v102 = vld [vmem:[%s101] sm:$0x2]
    %vm103 = vcmask 1041409
    %v104 = vsel %vm103, %v102, %v100
    %105 = vrot.lane.b32.xlu0 %v104, 108
    %v106 = vpop.permute.xlu0 %105
    %vm107 = vcmask 900960
    %108 = vst.msk [vmem:[#allocation0] ss:$8 sm:$0x3] %vm107, %v106
    %s109 = scalar_lea.vmem %s0, 53
    %v110 = vld [vmem:[%s109] sm:$0x1]
    %s111 = scalar_lea.vmem %s0, 116
    %v112 = vld [vmem:[%s111] sm:$0x2]
    %vm113 = vcmask 1041409
    %v114 = vsel %vm113, %v112, %v110
    %115 = vrot.lane.b32.xlu0 %v114, 106
    %v116 = vpop.permute.xlu0 %115
    %vm117 = vcmask 884560
    %118 = vst.msk [vmem:[#allocation0] ss:$8 sm:$0x3] %vm117, %v116
    %s119 = scalar_lea.vmem %s0, 52
    %v120 = vld [vmem:[%s119] sm:$0x1]
    %s121 = scalar_lea.vmem %s0, 115
    %v122 = vld [vmem:[%s121] sm:$0x2]
    %vm123 = vcmask 1041409
    %v124 = vsel %vm123, %v122, %v120
    %125 = vrot.lane.b32.xlu0 %v124, 104
    %v126 = vpop.permute.xlu0 %125
    %vm127 = vcmask 868160
    %128 = vst.msk [vmem:[#allocation0] ss:$8 sm:$0x3] %vm127, %v126
    %s129 = scalar_lea.vmem %s0, 51
    %v130 = vld [vmem:[%s129] sm:$0x1]
    %s131 = scalar_lea.vmem %s0, 114
    %v132 = vld [vmem:[%s131] sm:$0x2]
    %vm133 = vcmask 1041409
    %v134 = vsel %vm133, %v132, %v130
    %135 = vrot.lane.b32.xlu0 %v134, 102
    %v136 = vpop.permute.xlu0 %135
    %vm137 = vcmask 851760
    %138 = vst.msk [vmem:[#allocation0] ss:$8 sm:$0x3] %vm137, %v136
    %s139 = scalar_lea.vmem %s0, 50
    %v140 = vld [vmem:[%s139] sm:$0x1]
    %s141 = scalar_lea.vmem %s0, 113
    %v142 = vld [vmem:[%s141] sm:$0x2]
    %vm143 = vcmask 1041409
    %v144 = vsel %vm143, %v142, %v140
    %145 = vrot.lane.b32.xlu0 %v144, 100
    %v146 = vpop.permute.xlu0 %145
    %vm147 = vcmask 835360
    %148 = vst.msk [vmem:[#allocation0] ss:$8 sm:$0x3] %vm147, %v146
    %s149 = scalar_lea.vmem %s0, 49
    %v150 = vld [vmem:[%s149] sm:$0x1]
    %s151 = scalar_lea.vmem %s0, 112
    %v152 = vld [vmem:[%s151] sm:$0x2]
    %vm153 = vcmask 1041409
    %v154 = vsel %vm153, %v152, %v150
    %155 = vrot.lane.b32.xlu0 %v154, 98
    %v156 = vpop.permute.xlu0 %155
    %vm157 = vcmask 818960
    %158 = vst.msk [vmem:[#allocation0] ss:$8 sm:$0x3] %vm157, %v156
    %s159 = scalar_lea.vmem %s0, 48
    %v160 = vld [vmem:[%s159] sm:$0x1]
    %s161 = scalar_lea.vmem %s0, 111
    %v162 = vld [vmem:[%s161] sm:$0x2]
    %vm163 = vcmask 1041409
    %v164 = vsel %vm163, %v162, %v160
    %165 = vrot.lane.b32.xlu0 %v164, 96
    %v166 = vpop.permute.xlu0 %165
    %vm167 = vcmask 802560
    %168 = vst.msk [vmem:[#allocation0] ss:$8 sm:$0x3] %vm167, %v166
    %s169 = scalar_lea.vmem %s0, 47
    %v170 = vld [vmem:[%s169] sm:$0x1]
    %s171 = scalar_lea.vmem %s0, 110
    %v172 = vld [vmem:[%s171] sm:$0x2]
    %vm173 = vcmask 1041409
    %v174 = vsel %vm173, %v172, %v170
    %175 = vrot.lane.b32.xlu0 %v174, 94
    %v176 = vpop.permute.xlu0 %175
    %vm177 = vcmask 786160
    %178 = vst.msk [vmem:[#allocation0] ss:$8 sm:$0x3] %vm177, %v176
    %s179 = scalar_lea.vmem %s0, 46
    %v180 = vld [vmem:[%s179] sm:$0x1]
    %s181 = scalar_lea.vmem %s0, 109
    %v182 = vld [vmem:[%s181] sm:$0x2]
    %vm183 = vcmask 1041409
    %v184 = vsel %vm183, %v182, %v180
    %185 = vrot.lane.b32.xlu0 %v184, 92
    %v186 = vpop.permute.xlu0 %185
    %vm187 = vcmask 769760
    %188 = vst.msk [vmem:[#allocation0] ss:$8 sm:$0x3] %vm187, %v186
    %s189 = scalar_lea.vmem %s0, 45
    %v190 = vld [vmem:[%s189] sm:$0x1]
    %s191 = scalar_lea.vmem %s0, 108
    %v192 = vld [vmem:[%s191] sm:$0x2]
    %vm193 = vcmask 1041409
    %v194 = vsel %vm193, %v192, %v190
    %195 = vrot.lane.b32.xlu0 %v194, 90
    %v196 = vpop.permute.xlu0 %195
    %vm197 = vcmask 753360
    %198 = vst.msk [vmem:[#allocation0] ss:$8 sm:$0x3] %vm197, %v196
    %s199 = scalar_lea.vmem %s0, 44
    %v200 = vld [vmem:[%s199] sm:$0x1]
    %s201 = scalar_lea.vmem %s0, 107
    %v202 = vld [vmem:[%s201] sm:$0x2]
    %vm203 = vcmask 1041409
    %v204 = vsel %vm203, %v202, %v200
    %205 = vrot.lane.b32.xlu0 %v204, 88
    %v206 = vpop.permute.xlu0 %205
    %vm207 = vcmask 736960
    %208 = vst.msk [vmem:[#allocation0] ss:$8 sm:$0x3] %vm207, %v206
    %s209 = scalar_lea.vmem %s0, 43
    %v210 = vld [vmem:[%s209] sm:$0x1]
    %s211 = scalar_lea.vmem %s0, 106
    %v212 = vld [vmem:[%s211] sm:$0x2]
    %vm213 = vcmask 1041409
    %v214 = vsel %vm213, %v212, %v210
    %215 = vrot.lane.b32.xlu0 %v214, 86
    %v216 = vpop.permute.xlu0 %215
    %vm217 = vcmask 720560
    %218 = vst.msk [vmem:[#allocation0] ss:$8 sm:$0x3] %vm217, %v216
    %s219 = scalar_lea.vmem %s0, 42
    %v220 = vld [vmem:[%s219] sm:$0x1]
    %s221 = scalar_lea.vmem %s0, 105
    %v222 = vld [vmem:[%s221] sm:$0x2]
    %vm223 = vcmask 1041409
    %v224 = vsel %vm223, %v222, %v220
    %225 = vrot.lane.b32.xlu0 %v224, 84
    %v226 = vpop.permute.xlu0 %225
    %vm227 = vcmask 704160
    %228 = vst.msk [vmem:[#allocation0] ss:$8 sm:$0x3] %vm227, %v226
    %s229 = scalar_lea.vmem %s0, 41
    %v230 = vld [vmem:[%s229] sm:$0x1]
    %s231 = scalar_lea.vmem %s0, 104
    %v232 = vld [vmem:[%s231] sm:$0x2]
    %vm233 = vcmask 1041409
    %v234 = vsel %vm233, %v232, %v230
    %235 = vrot.lane.b32.xlu0 %v234, 82
    %v236 = vpop.permute.xlu0 %235
    %vm237 = vcmask 687760
    %238 = vst.msk [vmem:[#allocation0] ss:$8 sm:$0x3] %vm237, %v236
    %s239 = scalar_lea.vmem %s0, 40
    %v240 = vld [vmem:[%s239] sm:$0x1]
    %s241 = scalar_lea.vmem %s0, 103
    %v242 = vld [vmem:[%s241] sm:$0x2]
    %vm243 = vcmask 1041409
    %v244 = vsel %vm243, %v242, %v240
    %245 = vrot.lane.b32.xlu0 %v244, 80
    %v246 = vpop.permute.xlu0 %245
    %vm247 = vcmask 671360
    %248 = vst.msk [vmem:[#allocation0] ss:$8 sm:$0x3] %vm247, %v246
    %s249 = scalar_lea.vmem %s0, 39
    %v250 = vld [vmem:[%s249] sm:$0x1]
    %s251 = scalar_lea.vmem %s0, 102
    %v252 = vld [vmem:[%s251] sm:$0x2]
    %vm253 = vcmask 1041409
    %v254 = vsel %vm253, %v252, %v250
    %255 = vrot.lane.b32.xlu0 %v254, 78
    %v256 = vpop.permute.xlu0 %255
    %vm257 = vcmask 654960
    %258 = vst.msk [vmem:[#allocation0] ss:$8 sm:$0x3] %vm257, %v256
    %s259 = scalar_lea.vmem %s0, 38
    %v260 = vld [vmem:[%s259] sm:$0x1]
    %s261 = scalar_lea.vmem %s0, 101
    %v262 = vld [vmem:[%s261] sm:$0x2]
    %vm263 = vcmask 1041409
    %v264 = vsel %vm263, %v262, %v260
    %265 = vrot.lane.b32.xlu0 %v264, 76
    %v266 = vpop.permute.xlu0 %265
    %vm267 = vcmask 638560
    %268 = vst.msk [vmem:[#allocation0] ss:$8 sm:$0x3] %vm267, %v266
    %s269 = scalar_lea.vmem %s0, 37
    %v270 = vld [vmem:[%s269] sm:$0x1]
    %s271 = scalar_lea.vmem %s0, 100
    %v272 = vld [vmem:[%s271] sm:$0x2]
    %vm273 = vcmask 1041409
    %v274 = vsel %vm273, %v272, %v270
    %275 = vrot.lane.b32.xlu0 %v274, 74
    %v276 = vpop.permute.xlu0 %275
    %vm277 = vcmask 622160
    %278 = vst.msk [vmem:[#allocation0] ss:$8 sm:$0x3] %vm277, %v276
    %s279 = scalar_lea.vmem %s0, 36
    %v280 = vld [vmem:[%s279] sm:$0x1]
    %s281 = scalar_lea.vmem %s0, 99
    %v282 = vld [vmem:[%s281] sm:$0x2]
    %vm283 = vcmask 1041409
    %v284 = vsel %vm283, %v282, %v280
    %285 = vrot.lane.b32.xlu0 %v284, 72
    %v286 = vpop.permute.xlu0 %285
    %vm287 = vcmask 605760
    %288 = vst.msk [vmem:[#allocation0] ss:$8 sm:$0x3] %vm287, %v286
    %s289 = scalar_lea.vmem %s0, 35
    %v290 = vld [vmem:[%s289] sm:$0x1]
    %s291 = scalar_lea.vmem %s0, 98
    %v292 = vld [vmem:[%s291] sm:$0x2]
    %vm293 = vcmask 1041409
    %v294 = vsel %vm293, %v292, %v290
    %295 = vrot.lane.b32.xlu0 %v294, 70
    %v296 = vpop.permute.xlu0 %295
    %vm297 = vcmask 589360
    %298 = vst.msk [vmem:[#allocation0] ss:$8 sm:$0x3] %vm297, %v296
    %s299 = scalar_lea.vmem %s0, 34
    %v300 = vld [vmem:[%s299] sm:$0x1]
    %s301 = scalar_lea.vmem %s0, 97
    %v302 = vld [vmem:[%s301] sm:$0x2]
    %vm303 = vcmask 1041409
    %v304 = vsel %vm303, %v302, %v300
    %305 = vrot.lane.b32.xlu0 %v304, 68
    %v306 = vpop.permute.xlu0 %305
    %vm307 = vcmask 572960
    %308 = vst.msk [vmem:[#allocation0] ss:$8 sm:$0x3] %vm307, %v306
    %s309 = scalar_lea.vmem %s0, 33
    %v310 = vld [vmem:[%s309] sm:$0x1]
    %s311 = scalar_lea.vmem %s0, 96
    %v312 = vld [vmem:[%s311] sm:$0x2]
    %vm313 = vcmask 1041409
    %v314 = vsel %vm313, %v312, %v310
    %315 = vrot.lane.b32.xlu0 %v314, 66
    %v316 = vpop.permute.xlu0 %315
    %vm317 = vcmask 556560
    %318 = vst.msk [vmem:[#allocation0] ss:$8 sm:$0x3] %vm317, %v316
    %s319 = scalar_lea.vmem %s0, 32
    %v320 = vld [vmem:[%s319] sm:$0x1]
    %s321 = scalar_lea.vmem %s0, 95
    %v322 = vld [vmem:[%s321] sm:$0x2]
    %vm323 = vcmask 1041409
    %v324 = vsel %vm323, %v322, %v320
    %325 = vrot.lane.b32.xlu0 %v324, 64
    %v326 = vpop.permute.xlu0 %325
    %vm327 = vcmask 540160
    %328 = vst.msk [vmem:[#allocation0] ss:$8 sm:$0x3] %vm327, %v326
    %s329 = scalar_lea.vmem %s0, 31
    %v330 = vld [vmem:[%s329] sm:$0x1]
    %s331 = scalar_lea.vmem %s0, 94
    %v332 = vld [vmem:[%s331] sm:$0x2]
    %vm333 = vcmask 1041409
    %v334 = vsel %vm333, %v332, %v330
    %335 = vrot.lane.b32.xlu0 %v334, 62
    %v336 = vpop.permute.xlu0 %335
    %vm337 = vcmask 523760
    %338 = vst.msk [vmem:[#allocation0] ss:$8 sm:$0x3] %vm337, %v336
    %s339 = scalar_lea.vmem %s0, 30
    %v340 = vld [vmem:[%s339] sm:$0x1]
    %s341 = scalar_lea.vmem %s0, 93
    %v342 = vld [vmem:[%s341] sm:$0x2]
    %vm343 = vcmask 1041409
    %v344 = vsel %vm343, %v342, %v340
    %345 = vrot.lane.b32.xlu0 %v344, 60
    %v346 = vpop.permute.xlu0 %345
    %vm347 = vcmask 507360
    %348 = vst.msk [vmem:[#allocation0] ss:$8 sm:$0x3] %vm347, %v346
    %s349 = scalar_lea.vmem %s0, 29
    %v350 = vld [vmem:[%s349] sm:$0x1]
    %s351 = scalar_lea.vmem %s0, 92
    %v352 = vld [vmem:[%s351] sm:$0x2]
    %vm353 = vcmask 1041409
    %v354 = vsel %vm353, %v352, %v350
    %355 = vrot.lane.b32.xlu0 %v354, 58
    %v356 = vpop.permute.xlu0 %355
    %vm357 = vcmask 490960
    %358 = vst.msk [vmem:[#allocation0] ss:$8 sm:$0x3] %vm357, %v356
    %s359 = scalar_lea.vmem %s0, 28
    %v360 = vld [vmem:[%s359] sm:$0x1]
    %s361 = scalar_lea.vmem %s0, 91
    %v362 = vld [vmem:[%s361] sm:$0x2]
    %vm363 = vcmask 1041409
    %v364 = vsel %vm363, %v362, %v360
    %365 = vrot.lane.b32.xlu0 %v364, 56
    %v366 = vpop.permute.xlu0 %365
    %vm367 = vcmask 474560
    %368 = vst.msk [vmem:[#allocation0] ss:$8 sm:$0x3] %vm367, %v366
    %s369 = scalar_lea.vmem %s0, 27
    %v370 = vld [vmem:[%s369] sm:$0x1]
    %s371 = scalar_lea.vmem %s0, 90
    %v372 = vld [vmem:[%s371] sm:$0x2]
    %vm373 = vcmask 1041409
    %v374 = vsel %vm373, %v372, %v370
    %375 = vrot.lane.b32.xlu0 %v374, 54
    %v376 = vpop.permute.xlu0 %375
    %vm377 = vcmask 458160
    %378 = vst.msk [vmem:[#allocation0] ss:$8 sm:$0x3] %vm377, %v376
    %s379 = scalar_lea.vmem %s0, 26
    %v380 = vld [vmem:[%s379] sm:$0x1]
    %s381 = scalar_lea.vmem %s0, 89
    %v382 = vld [vmem:[%s381] sm:$0x2]
    %vm383 = vcmask 1041409
    %v384 = vsel %vm383, %v382, %v380
    %385 = vrot.lane.b32.xlu0 %v384, 52
    %v386 = vpop.permute.xlu0 %385
    %vm387 = vcmask 441760
    %388 = vst.msk [vmem:[#allocation0] ss:$8 sm:$0x3] %vm387, %v386
    %s389 = scalar_lea.vmem %s0, 25
    %v390 = vld [vmem:[%s389] sm:$0x1]
    %s391 = scalar_lea.vmem %s0, 88
    %v392 = vld [vmem:[%s391] sm:$0x2]
    %vm393 = vcmask 1041409
    %v394 = vsel %vm393, %v392, %v390
    %395 = vrot.lane.b32.xlu0 %v394, 50
    %v396 = vpop.permute.xlu0 %395
    %vm397 = vcmask 425360
    %398 = vst.msk [vmem:[#allocation0] ss:$8 sm:$0x3] %vm397, %v396
    %s399 = scalar_lea.vmem %s0, 24
    %v400 = vld [vmem:[%s399] sm:$0x1]
    %s401 = scalar_lea.vmem %s0, 87
    %v402 = vld [vmem:[%s401] sm:$0x2]
    %vm403 = vcmask 1041409
    %v404 = vsel %vm403, %v402, %v400
    %405 = vrot.lane.b32.xlu0 %v404, 48
    %v406 = vpop.permute.xlu0 %405
    %vm407 = vcmask 408960
    %408 = vst.msk [vmem:[#allocation0] ss:$8 sm:$0x3] %vm407, %v406
    %s409 = scalar_lea.vmem %s0, 23
    %v410 = vld [vmem:[%s409] sm:$0x1]
    %s411 = scalar_lea.vmem %s0, 86
    %v412 = vld [vmem:[%s411] sm:$0x2]
    %vm413 = vcmask 1041409
    %v414 = vsel %vm413, %v412, %v410
    %415 = vrot.lane.b32.xlu0 %v414, 46
    %v416 = vpop.permute.xlu0 %415
    %vm417 = vcmask 392560
    %418 = vst.msk [vmem:[#allocation0] ss:$8 sm:$0x3] %vm417, %v416
    %s419 = scalar_lea.vmem %s0, 22
    %v420 = vld [vmem:[%s419] sm:$0x1]
    %s421 = scalar_lea.vmem %s0, 85
    %v422 = vld [vmem:[%s421] sm:$0x2]
    %vm423 = vcmask 1041409
    %v424 = vsel %vm423, %v422, %v420
    %425 = vrot.lane.b32.xlu0 %v424, 44
    %v426 = vpop.permute.xlu0 %425
    %vm427 = vcmask 376160
    %428 = vst.msk [vmem:[#allocation0] ss:$8 sm:$0x3] %vm427, %v426
    %s429 = scalar_lea.vmem %s0, 21
    %v430 = vld [vmem:[%s429] sm:$0x1]
    %s431 = scalar_lea.vmem %s0, 84
    %v432 = vld [vmem:[%s431] sm:$0x2]
    %vm433 = vcmask 1041409
    %v434 = vsel %vm433, %v432, %v430
    %435 = vrot.lane.b32.xlu0 %v434, 42
    %v436 = vpop.permute.xlu0 %435
    %vm437 = vcmask 359760
    %438 = vst.msk [vmem:[#allocation0] ss:$8 sm:$0x3] %vm437, %v436
    %s439 = scalar_lea.vmem %s0, 20
    %v440 = vld [vmem:[%s439] sm:$0x1]
    %s441 = scalar_lea.vmem %s0, 83
    %v442 = vld [vmem:[%s441] sm:$0x2]
    %vm443 = vcmask 1041409
    %v444 = vsel %vm443, %v442, %v440
    %445 = vrot.lane.b32.xlu0 %v444, 40
    %v446 = vpop.permute.xlu0 %445
    %vm447 = vcmask 343360
    %448 = vst.msk [vmem:[#allocation0] ss:$8 sm:$0x3] %vm447, %v446
    %s449 = scalar_lea.vmem %s0, 19
    %v450 = vld [vmem:[%s449] sm:$0x1]
    %s451 = scalar_lea.vmem %s0, 82
    %v452 = vld [vmem:[%s451] sm:$0x2]
    %vm453 = vcmask 1041409
    %v454 = vsel %vm453, %v452, %v450
    %455 = vrot.lane.b32.xlu0 %v454, 38
    %v456 = vpop.permute.xlu0 %455
    %vm457 = vcmask 326960
    %458 = vst.msk [vmem:[#allocation0] ss:$8 sm:$0x3] %vm457, %v456
    %s459 = scalar_lea.vmem %s0, 18
    %v460 = vld [vmem:[%s459] sm:$0x1]
    %s461 = scalar_lea.vmem %s0, 81
    %v462 = vld [vmem:[%s461] sm:$0x2]
    %vm463 = vcmask 1041409
    %v464 = vsel %vm463, %v462, %v460
    %465 = vrot.lane.b32.xlu0 %v464, 36
    %v466 = vpop.permute.xlu0 %465
    %vm467 = vcmask 310560
    %468 = vst.msk [vmem:[#allocation0] ss:$8 sm:$0x3] %vm467, %v466
    %s469 = scalar_lea.vmem %s0, 17
    %v470 = vld [vmem:[%s469] sm:$0x1]
    %s471 = scalar_lea.vmem %s0, 80
    %v472 = vld [vmem:[%s471] sm:$0x2]
    %vm473 = vcmask 1041409
    %v474 = vsel %vm473, %v472, %v470
    %475 = vrot.lane.b32.xlu0 %v474, 34
    %v476 = vpop.permute.xlu0 %475
    %vm477 = vcmask 294160
    %478 = vst.msk [vmem:[#allocation0] ss:$8 sm:$0x3] %vm477, %v476
    %s479 = scalar_lea.vmem %s0, 16
    %v480 = vld [vmem:[%s479] sm:$0x1]
    %s481 = scalar_lea.vmem %s0, 79
    %v482 = vld [vmem:[%s481] sm:$0x2]
    %vm483 = vcmask 1041409
    %v484 = vsel %vm483, %v482, %v480
    %485 = vrot.lane.b32.xlu0 %v484, 32
    %v486 = vpop.permute.xlu0 %485
    %vm487 = vcmask 277760
    %488 = vst.msk [vmem:[#allocation0] ss:$8 sm:$0x3] %vm487, %v486
    %s489 = scalar_lea.vmem %s0, 15
    %v490 = vld [vmem:[%s489] sm:$0x1]
    %s491 = scalar_lea.vmem %s0, 78
    %v492 = vld [vmem:[%s491] sm:$0x2]
    %vm493 = vcmask 1041409
    %v494 = vsel %vm493, %v492, %v490
    %495 = vrot.lane.b32.xlu0 %v494, 30
    %v496 = vpop.permute.xlu0 %495
    %vm497 = vcmask 261360
    %498 = vst.msk [vmem:[#allocation0] ss:$8 sm:$0x3] %vm497, %v496
    %s499 = scalar_lea.vmem %s0, 14
    %v500 = vld [vmem:[%s499] sm:$0x1]
    %s501 = scalar_lea.vmem %s0, 77
    %v502 = vld [vmem:[%s501] sm:$0x2]
    %vm503 = vcmask 1041409
    %v504 = vsel %vm503, %v502, %v500
    %505 = vrot.lane.b32.xlu0 %v504, 28
    %v506 = vpop.permute.xlu0 %505
    %vm507 = vcmask 244960
    %508 = vst.msk [vmem:[#allocation0] ss:$8 sm:$0x3] %vm507, %v506
    %s509 = scalar_lea.vmem %s0, 13
    %v510 = vld [vmem:[%s509] sm:$0x1]
    %s511 = scalar_lea.vmem %s0, 76
    %v512 = vld [vmem:[%s511] sm:$0x2]
    %vm513 = vcmask 1041409
    %v514 = vsel %vm513, %v512, %v510
    %515 = vrot.lane.b32.xlu0 %v514, 26
    %v516 = vpop.permute.xlu0 %515
    %vm517 = vcmask 228560
    %518 = vst.msk [vmem:[#allocation0] ss:$8 sm:$0x3] %vm517, %v516
    %s519 = scalar_lea.vmem %s0, 12
    %v520 = vld [vmem:[%s519] sm:$0x1]
    %s521 = scalar_lea.vmem %s0, 75
    %v522 = vld [vmem:[%s521] sm:$0x2]
    %vm523 = vcmask 1041409
    %v524 = vsel %vm523, %v522, %v520
    %525 = vrot.lane.b32.xlu0 %v524, 24
    %v526 = vpop.permute.xlu0 %525
    %vm527 = vcmask 212160
    %528 = vst.msk [vmem:[#allocation0] ss:$8 sm:$0x3] %vm527, %v526
    %s529 = scalar_lea.vmem %s0, 11
    %v530 = vld [vmem:[%s529] sm:$0x1]
    %s531 = scalar_lea.vmem %s0, 74
    %v532 = vld [vmem:[%s531] sm:$0x2]
    %vm533 = vcmask 1041409
    %v534 = vsel %vm533, %v532, %v530
    %535 = vrot.lane.b32.xlu0 %v534, 22
    %v536 = vpop.permute.xlu0 %535
    %vm537 = vcmask 195760
    %538 = vst.msk [vmem:[#allocation0] ss:$8 sm:$0x3] %vm537, %v536
    %s539 = scalar_lea.vmem %s0, 10
    %v540 = vld [vmem:[%s539] sm:$0x1]
    %s541 = scalar_lea.vmem %s0, 73
    %v542 = vld [vmem:[%s541] sm:$0x2]
    %vm543 = vcmask 1041409
    %v544 = vsel %vm543, %v542, %v540
    %545 = vrot.lane.b32.xlu0 %v544, 20
    %v546 = vpop.permute.xlu0 %545
    %vm547 = vcmask 179360
    %548 = vst.msk [vmem:[#allocation0] ss:$8 sm:$0x3] %vm547, %v546
    %s549 = scalar_lea.vmem %s0, 9
    %v550 = vld [vmem:[%s549] sm:$0x1]
    %s551 = scalar_lea.vmem %s0, 72
    %v552 = vld [vmem:[%s551] sm:$0x2]
    %vm553 = vcmask 1041409
    %v554 = vsel %vm553, %v552, %v550
    %555 = vrot.lane.b32.xlu0 %v554, 18
    %v556 = vpop.permute.xlu0 %555
    %vm557 = vcmask 162960
    %558 = vst.msk [vmem:[#allocation0] ss:$8 sm:$0x3] %vm557, %v556
    %s559 = scalar_lea.vmem %s0, 8
    %v560 = vld [vmem:[%s559] sm:$0x1]
    %s561 = scalar_lea.vmem %s0, 71
    %v562 = vld [vmem:[%s561] sm:$0x2]
    %vm563 = vcmask 1041409
    %v564 = vsel %vm563, %v562, %v560
    %565 = vrot.lane.b32.xlu0 %v564, 16
    %v566 = vpop.permute.xlu0 %565
    %vm567 = vcmask 146560
    %568 = vst.msk [vmem:[#allocation0] ss:$8 sm:$0x3] %vm567, %v566
    %s569 = scalar_lea.vmem %s0, 7
    %v570 = vld [vmem:[%s569] sm:$0x1]
    %s571 = scalar_lea.vmem %s0, 70
    %v572 = vld [vmem:[%s571] sm:$0x2]
    %vm573 = vcmask 1041409
    %v574 = vsel %vm573, %v572, %v570
    %575 = vrot.lane.b32.xlu0 %v574, 14
    %v576 = vpop.permute.xlu0 %575
    %vm577 = vcmask 130160
    %578 = vst.msk [vmem:[#allocation0] ss:$8 sm:$0x3] %vm577, %v576
    %s579 = scalar_lea.vmem %s0, 6
    %v580 = vld [vmem:[%s579] sm:$0x1]
    %s581 = scalar_lea.vmem %s0, 69
    %v582 = vld [vmem:[%s581] sm:$0x2]
    %vm583 = vcmask 1041409
    %v584 = vsel %vm583, %v582, %v580
    %585 = vrot.lane.b32.xlu0 %v584, 12
    %v586 = vpop.permute.xlu0 %585
    %vm587 = vcmask 113760
    %588 = vst.msk [vmem:[#allocation0] ss:$8 sm:$0x3] %vm587, %v586
    %s589 = scalar_lea.vmem %s0, 5
    %v590 = vld [vmem:[%s589] sm:$0x1]
    %s591 = scalar_lea.vmem %s0, 68
    %v592 = vld [vmem:[%s591] sm:$0x2]
    %vm593 = vcmask 1041409
    %v594 = vsel %vm593, %v592, %v590
    %595 = vrot.lane.b32.xlu0 %v594, 10
    %v596 = vpop.permute.xlu0 %595
    %vm597 = vcmask 97360
    %598 = vst.msk [vmem:[#allocation0] ss:$8 sm:$0x3] %vm597, %v596
    %s599 = scalar_lea.vmem %s0, 4
    %v600 = vld [vmem:[%s599] sm:$0x1]
    %s601 = scalar_lea.vmem %s0, 67
    %v602 = vld [vmem:[%s601] sm:$0x2]
    %vm603 = vcmask 1041409
    %v604 = vsel %vm603, %v602, %v600
    %605 = vrot.lane.b32.xlu0 %v604, 8
    %v606 = vpop.permute.xlu0 %605
    %vm607 = vcmask 80960
    %608 = vst.msk [vmem:[#allocation0] ss:$8 sm:$0x3] %vm607, %v606
    %s609 = scalar_lea.vmem %s0, 3
    %v610 = vld [vmem:[%s609] sm:$0x1]
    %s611 = scalar_lea.vmem %s0, 66
    %v612 = vld [vmem:[%s611] sm:$0x2]
    %vm613 = vcmask 1041409
    %v614 = vsel %vm613, %v612, %v610
    %615 = vrot.lane.b32.xlu0 %v614, 6
    %v616 = vpop.permute.xlu0 %615
    %vm617 = vcmask 64560
    %618 = vst.msk [vmem:[#allocation0] ss:$8 sm:$0x3] %vm617, %v616
    %s619 = scalar_lea.vmem %s0, 2
    %v620 = vld [vmem:[%s619] sm:$0x1]
    %s621 = scalar_lea.vmem %s0, 65
    %v622 = vld [vmem:[%s621] sm:$0x2]
    %vm623 = vcmask 1041409
    %v624 = vsel %vm623, %v622, %v620
    %625 = vrot.lane.b32.xlu0 %v624, 4
    %v626 = vpop.permute.xlu0 %625
    %vm627 = vcmask 48160
    %628 = vst.msk [vmem:[#allocation0] ss:$8 sm:$0x3] %vm627, %v626
    %s629 = scalar_lea.vmem %s0, 1
    %v630 = vld [vmem:[%s629] sm:$0x1]
    %s631 = scalar_lea.vmem %s0, 64
    %v632 = vld [vmem:[%s631] sm:$0x2]
    %vm633 = vcmask 1041409
    %v634 = vsel %vm633, %v632, %v630
    %635 = vrot.lane.b32.xlu0 %v634, 2
    %v636 = vpop.permute.xlu0 %635
    %vm637 = vcmask 31760
    %638 = vst.msk [vmem:[#allocation0] ss:$8 sm:$0x3] %vm637, %v636
    %s640 = sshllo.u32 0, 1
    %v642 = vld [vmem:[#allocation0] sm:%s640]
    %s643 = sshllo.u32 0, 1
    %644 = vst [vmem:[%s1] sm:%s643] %v642
    %s645 = scalar_lea.vmem [#allocation0], 8
    %v646 = vld [vmem:[%s645] sm:%s640]
    %s647 = sshllo.u32 0, 1
    %s648 = scalar_lea.vmem %s1, 1
    %649 = vst [vmem:[%s648] sm:%s647] %v646

// kernel: proposer_policy_forward.1
$region0: #{proposer_policy_forward.1}
  #allocation0 [shape = 'u32[]', space=smem, size = 0x4, offset = 0x4, fixed_abs, tag = 'smem constant byte address 0x4 - core index']
  #allocation1 [shape = 'u32[144,128]{1,0:T(1,128)}', space=vmem, size = 0x12000, scoped, tag = 'internal scratch']
  %s0 = inlined_call_operand.vmem [shape: f32[1,256], index: 0, kind: input, shape index: {}]
  %s1 = inlined_call_operand.vmem [shape: f32[1,256], index: 1, kind: input, shape index: {}]
  %s2 = inlined_call_operand.vmem [shape: f32[8,256], index: 2, kind: input, shape index: {}]
  %s3 = inlined_call_operand.vmem [shape: f32[8,256], index: 3, kind: output, shape index: {}]
  %s4 = sld [smem:[#allocation0]]
  $region22: #{proposer_policy_forward.1} parent=0
    _
  %s6 = ssub.s32 1, %s4
  %s7 = scalar_select 0, %s6, %s4
  // Predicated region
  $region2: #{proposer_policy_forward.1} parent=0 // pred_check
    _
  $region3: #{proposer_policy_forward.1} parent=0 // pred_check_branch
    %9 = sbr.rel (0) target = $region5
  $region4: #{proposer_policy_forward.1} parent=0 // pred_region
    _
  $region5: #{proposer_policy_forward.1} parent=0 // pred_fallthru
    _
  // Predicated region
  $region6: #{proposer_policy_forward.1} parent=0 // pred_check
    _
  $region7: #{proposer_policy_forward.1} parent=0 // pred_check_branch
    %11 = sbr.rel (0) target = $region9
  $region8: #{proposer_policy_forward.1} parent=0 // pred_region
    _
  $region9: #{proposer_policy_forward.1} parent=0 // pred_fallthru
    _
  // Predicated region
  $region10: #{proposer_policy_forward.1} parent=0 // pred_check
    _
  $region11: #{proposer_policy_forward.1} parent=0 // pred_check_branch
    %13 = sbr.rel (0) target = $region13
  $region12: #{proposer_policy_forward.1} parent=0 // pred_region
    _
  $region13: #{proposer_policy_forward.1} parent=0 // pred_fallthru
    _
  %v14 = vld [vmem:[%s2] sm:$0xff]
  %v15 = vld [vmem:[%s2 + $0x8] sm:$0xff]
  %v16 = vld [vmem:[%s0] sm:$0x3]
  %v18 = vlaneseq
  %v19 = vshrl.u32 %v18, 7
  %v20 = vsub.s32 0, %v19
  %v21 = vrot.slane %v16, %v20
  %v22 = vlaneseq
  %v23 = vshrl.u32 %v22, 7
  %v24 = vsub.s32 1, %v23
  %v25 = vrot.slane %v16, %v24
  %v28 = vmul.f32 %v14, %v21
  %v29 = vmul.f32 %v15, %v25
  %v30 = vld [vmem:[%s1] sm:$0x3]
  %v32 = vlaneseq
  %v33 = vshrl.u32 %v32, 7
  %v34 = vsub.s32 0, %v33
  %v35 = vrot.slane %v30, %v34
  %v36 = vlaneseq
  %v37 = vshrl.u32 %v36, 7
  %v38 = vsub.s32 1, %v37
  %v39 = vrot.slane %v30, %v38
  %v42 = vadd.f32 %v28, %v35
  %v43 = vadd.f32 %v29, %v39
  %v44 = vand.u32 2147483647, %v42
  %v45 = vand.u32 2147483647, %v43
  %46 = vst [vmem:[%s3] sm:$0xff] %v44
  %47 = vst [vmem:[%s3 + $0x8] sm:$0xff] %v45
  // Predicated region
  $region14: #{proposer_policy_forward.1} parent=0 // pred_check
    _
  $region15: #{proposer_policy_forward.1} parent=0 // pred_check_branch
    %49 = sbr.rel (0) target = $region17
  $region16: #{proposer_policy_forward.1} parent=0 // pred_region
    _
  $region17: #{proposer_policy_forward.1} parent=0 // pred_fallthru
    _
  // Predicated region
  $region18: #{proposer_policy_forward.1} parent=0 // pred_check
    _
  $region19: #{proposer_policy_forward.1} parent=0 // pred_check_branch
    %51 = sbr.rel (0) target = $region21
  $region20: #{proposer_policy_forward.1} parent=0 // pred_region
    _
  $region21: #{proposer_policy_forward.1} parent=0 // pred_fallthru
    _

</llo_original>
